<compile_context>
chip_gen: v5e
topology: v5e:2x2
jax: 0.10.0
libtpu: 0.0.40
codegen_flags: <defaults>
</compile_context>

<pallas_src>
import jax
import jax.numpy as jnp
from jax.experimental import pallas as pl
from jax.experimental.pallas import tpu as pltpu


def _round_up(x, m):
    return (x + m - 1) // m * m


# ----------------------------------------------------------------------------
# Pallas tiled matmul: bf16 operands, f32 accumulation, single K step.
# Weight matrix is pre-padded / pre-cast at parameter construction.
# ----------------------------------------------------------------------------
def _mm_kernel(a_ref, b_ref, o_ref):
    o_ref[...] = jnp.dot(a_ref[...], b_ref[...],
                         preferred_element_type=jnp.float32)


def pallas_matmul_prepacked(a, b_packed, n_true):
    """a: (M, K) float, b_packed: (Kp, Np) bf16 zero-padded -> (M, n_true) f32.

    K here is at most 4608 (3x3x512), so a whole (TM, Kp) x (Kp, TN) pair of
    bf16 tiles is only a few MiB: one K step, no accumulator scratch, no
    init/finalize pl.when, grid is purely ('parallel', 'parallel').
    """
    M, K = a.shape
    Kp, Np = b_packed.shape
    assert K <= Kp

    # Adaptive M tiling: never pad tiny M (2/8/32) up to 128.
    TM_CAP = 256
    Mp = _round_up(M, 16)
    if Mp > TM_CAP:
        Mp = _round_up(Mp, TM_CAP)
        TM = TM_CAP
    else:
        TM = Mp
    TN = 256 if (Np % 256 == 0) else 128
    TN = min(TN, Np)

    ap = jnp.pad(a.astype(jnp.bfloat16), ((0, Mp - M), (0, Kp - K)))

    out = pl.pallas_call(
        _mm_kernel,
        out_shape=jax.ShapeDtypeStruct((Mp, Np), jnp.float32),
        grid_spec=pltpu.PrefetchScalarGridSpec(
            num_scalar_prefetch=0,
            grid=(Mp // TM, Np // TN),
            in_specs=[pl.BlockSpec((TM, Kp), lambda i, j: (i, 0)),
                      pl.BlockSpec((Kp, TN), lambda i, j: (0, j))],
            out_specs=pl.BlockSpec((TM, TN), lambda i, j: (i, j))),
        compiler_params=pltpu.CompilerParams(
            dimension_semantics=("parallel", "parallel")),
    )(ap, b_packed)
    return out[:M, :n_true]


# ----------------------------------------------------------------------------
# Fused MLP kernel: [Linear -> BatchNorm1d(batch stats) -> ReLU] * H -> Linear.
# All (tiny) weights live in VMEM; bf16 dots with f32 accumulation; BN math in
# f32 on the VPU (v5e has no bf16 VPU).
# ----------------------------------------------------------------------------
def _make_mlp_kernel(n_hidden):
    def kernel(*refs):
        x_ref = refs[0]
        o_ref = refs[-1]
        h = x_ref[...].astype(jnp.float32)
        idx = 1
        for _ in range(n_hidden):
            w = refs[idx][...]
            g = refs[idx + 1][...]
            b = refs[idx + 2][...]
            idx += 3
            h = jnp.dot(h.astype(jnp.bfloat16), w,
                        preferred_element_type=jnp.float32)
            mean = jnp.mean(h, axis=0, keepdims=True)
            var = jnp.mean(jnp.square(h - mean), axis=0, keepdims=True)
            h = g * (h - mean) * jax.lax.rsqrt(var + 1e-5) + b
            h = jnp.maximum(h, 0.0)
        w_last = refs[idx][...]
        o_ref[...] = jnp.dot(h.astype(jnp.bfloat16), w_last,
                             preferred_element_type=jnp.float32)
    return kernel


def mlp_forward(x, mlp):
    B = x.shape[0]
    in_p = mlp['ws'][0].shape[0]
    out_p = mlp['ws'][-1].shape[1]
    xp = x.astype(jnp.float32)
    if xp.shape[1] < in_p:
        xp = jnp.pad(xp, ((0, 0), (0, in_p - xp.shape[1])))
    args = [xp]
    for i in range(mlp['n_hidden']):
        args += [mlp['ws'][i], mlp['gs'][i], mlp['bs'][i]]
    args.append(mlp['ws'][-1])
    out = pl.pallas_call(
        _make_mlp_kernel(mlp['n_hidden']),
        out_shape=jax.ShapeDtypeStruct((B, out_p), jnp.float32),
    )(*args)
    return out[:, :mlp['out_dim']]


# ----------------------------------------------------------------------------
# Fused Linear + bias kernel (classifier head), lane-dense padded output.
# ----------------------------------------------------------------------------
def _linear_bias_kernel(x_ref, w_ref, b_ref, o_ref):
    o_ref[...] = (jnp.dot(x_ref[...].astype(jnp.bfloat16), w_ref[...],
                          preferred_element_type=jnp.float32) + b_ref[...])


def classifier_forward(x, w_packed, b_packed, n_true):
    B = x.shape[0]
    out = pl.pallas_call(
        _linear_bias_kernel,
        out_shape=jax.ShapeDtypeStruct((B, w_packed.shape[1]), jnp.float32),
    )(x.astype(jnp.float32), w_packed, b_packed)
    return out[:, :n_true]


# ----------------------------------------------------------------------------
# Pallas kernel for the SimSiam loss:
#   0.5 * (-mean cos(p1, z2)) + 0.5 * (-mean cos(p2, z1))
# PyTorch-style per-norm eps clamping; EUP reciprocal for the division.
# ----------------------------------------------------------------------------
def _ssl_loss_kernel(p1_ref, z2_ref, p2_ref, z1_ref, o_ref):
    eps = 1e-8

    def neg_mean_cos(p, z):
        dot = jnp.sum(p * z, axis=1, keepdims=True)                  # (B, 1)
        pn = jnp.sqrt(jnp.sum(p * p, axis=1, keepdims=True))
        zn = jnp.sqrt(jnp.sum(z * z, axis=1, keepdims=True))
        denom = jnp.maximum(pn, eps) * jnp.maximum(zn, eps)
        cos = dot * pl.reciprocal(denom, approx=True)
        return -jnp.sum(cos, axis=0, keepdims=True) / p.shape[0]     # (1, 1)

    o_ref[...] = (0.5 * neg_mean_cos(p1_ref[...], z2_ref[...]) +
                  0.5 * neg_mean_cos(p2_ref[...], z1_ref[...]))


def ssl_loss_pallas(p1, z2, p2, z1):
    out = pl.pallas_call(
        _ssl_loss_kernel,
        out_shape=jax.ShapeDtypeStruct((1, 1), jnp.float32),
    )(p1.astype(jnp.float32), z2.astype(jnp.float32),
      p2.astype(jnp.float32), z1.astype(jnp.float32))
    return out[0, 0]


# ----------------------------------------------------------------------------
# Conv / pooling / batchnorm glue (im2col + Pallas matmul for conv).
# ----------------------------------------------------------------------------
def conv2d(x, cp, stride, pad):
    """x: (N, H, W, Cin) NHWC; cp: dict with pre-packed (Kp, Np) bf16 weight."""
    kh, kw, cout = cp['kh'], cp['kw'], cp['cout']
    N, H, W, C = x.shape
    xb = x.astype(jnp.bfloat16)                      # halve patch HBM traffic
    xp = jnp.pad(xb, ((0, 0), (pad, pad), (pad, pad), (0, 0)))
    Ho = (H + 2 * pad - kh) // stride + 1
    Wo = (W + 2 * pad - kw) // stride + 1
    # TODO(synk): im2col patches are still materialized in HBM; folding the
    # window extraction into the matmul kernel (manual DMA / Element index_map)
    # would remove the kh*kw activation blow-up but needs strided gather.
    cols = [xp[:, i:i + stride * Ho:stride, j:j + stride * Wo:stride, :]
            for i in range(kh) for j in range(kw)]
    patches = jnp.concatenate(cols, axis=-1).reshape(N * Ho * Wo, kh * kw * C)
    out = pallas_matmul_prepacked(patches, cp['wmat'], cout)
    return out.reshape(N, Ho, Wo, cout)


def maxpool2d(x, k=3, stride=2, pad=1):
    # single windowed pass instead of k*k full-tensor jnp.maximum sweeps
    return jax.lax.reduce_window(
        x, -jnp.inf, jax.lax.max,
        window_dimensions=(1, k, k, 1),
        window_strides=(1, stride, stride, 1),
        padding=((0, 0), (pad, pad), (pad, pad), (0, 0)))


def batchnorm2d(x, gamma, beta, eps=1e-5):
    # TODO(synk): training-mode BN needs batch stats of the conv output, so the
    # scale/shift cannot be folded into the matmul epilogue; kept in XLA.
    mean = jnp.mean(x, axis=(0, 1, 2), keepdims=True)
    var = jnp.mean((x - mean) ** 2, axis=(0, 1, 2), keepdims=True)
    return gamma * (x - mean) / jnp.sqrt(var + eps) + beta


def relu(x):
    return jnp.maximum(x, 0.0)


# ----------------------------------------------------------------------------
# Deterministic parameter construction (synthetic init, pre-packed weights).
# ----------------------------------------------------------------------------
def _key_iter(key):
    while True:
        key, sub = jax.random.split(key)
        yield sub


def _conv_param(key, kh, kw, cin, cout):
    std = (2.0 / (kh * kw * cin)) ** 0.5
    w = jax.random.normal(key, (kh, kw, cin, cout), jnp.float32) * std
    K = kh * kw * cin
    Kp, Np = _round_up(K, 128), _round_up(cout, 128)
    wmat = jnp.pad(w.reshape(K, cout), ((0, Kp - K), (0, Np - cout)))
    return {'wmat': wmat.astype(jnp.bfloat16),
            'kh': kh, 'kw': kw, 'cin': cin, 'cout': cout}


def _lin_w_padded(key, cin, cout):
    std = (1.0 / cin) ** 0.5
    w = jax.random.normal(key, (cin, cout), jnp.float32) * std
    cinp, coutp = _round_up(cin, 128), _round_up(cout, 128)
    return jnp.pad(w, ((0, cinp - cin), (0, coutp - cout))).astype(jnp.bfloat16)


def make_resnet18_params(keys, in_ch):
    P = {'conv1': _conv_param(next(keys), 7, 7, in_ch, 64),
         'bn1_g': jnp.ones((64,), jnp.float32),
         'bn1_b': jnp.zeros((64,), jnp.float32)}

    def make_block(cin, cout, stride):
        blk = {'stride': stride,
               'conv1': _conv_param(next(keys), 3, 3, cin, cout),
               'bn1_g': jnp.ones((cout,), jnp.float32),
               'bn1_b': jnp.zeros((cout,), jnp.float32),
               'conv2': _conv_param(next(keys), 3, 3, cout, cout),
               # zero_init_residual=True -> last BN gamma is zero
               'bn2_g': jnp.zeros((cout,), jnp.float32),
               'bn2_b': jnp.zeros((cout,), jnp.float32)}
        if stride != 1 or cin != cout:
            blk['down'] = _conv_param(next(keys), 1, 1, cin, cout)
            blk['dbn_g'] = jnp.ones((cout,), jnp.float32)
            blk['dbn_b'] = jnp.zeros((cout,), jnp.float32)
        return blk

    stages = [(64, 64, 1), (64, 128, 2), (128, 256, 2), (256, 512, 2)]
    for li, (cin, cout, s) in enumerate(stages, start=1):
        P[f'layer{li}'] = [make_block(cin, cout, s), make_block(cout, cout, 1)]
    return P


def make_mlp_params(keys, sizes):
    n_hidden = max(len(sizes) - 2, 0)
    ws, gs, bs = [], [], []
    if len(sizes) == 1:
        ws.append(_lin_w_padded(next(keys), sizes[-1], sizes[-1]))
        out_dim = sizes[-1]
    else:
        for i in range(n_hidden):
            ws.append(_lin_w_padded(next(keys), sizes[i], sizes[i + 1]))
            d = _round_up(sizes[i + 1], 128)
            g = jnp.zeros((1, d), jnp.float32).at[:, :sizes[i + 1]].set(1.0)
            gs.append(g)
            bs.append(jnp.zeros((1, d), jnp.float32))
        ws.append(_lin_w_padded(next(keys), sizes[-2], sizes[-1]))
        out_dim = sizes[-1]
    return {'n_hidden': n_hidden, 'ws': ws, 'gs': gs, 'bs': bs,
            'out_dim': out_dim}


# ----------------------------------------------------------------------------
# Forward passes.
# ----------------------------------------------------------------------------
def basic_block(x, p):
    identity = x
    out = conv2d(x, p['conv1'], p['stride'], 1)
    out = relu(batchnorm2d(out, p['bn1_g'], p['bn1_b']))
    out = conv2d(out, p['conv2'], 1, 1)
    out = batchnorm2d(out, p['bn2_g'], p['bn2_b'])
    if 'down' in p:
        identity = batchnorm2d(conv2d(x, p['down'], p['stride'], 0),
                               p['dbn_g'], p['dbn_b'])
    return relu(out + identity)


def backbone_forward(x, P):
    # x: (N, H, W, C) NHWC
    x = conv2d(x, P['conv1'], 2, 3)
    x = relu(batchnorm2d(x, P['bn1_g'], P['bn1_b']))
    x = maxpool2d(x, 3, 2, 1)
    for layer in ('layer1', 'layer2', 'layer3', 'layer4'):
        for blk in P[layer]:
            x = basic_block(x, blk)
    return jnp.mean(x, axis=(1, 2))      # adaptive avgpool(1,1) + flatten -> (N, 512)


def simsiam_forward(params, y1, y2, labels):
    """y1: (N, 3, H, W) NCHW, y2: (N, 1, H, W) NCHW, labels: (N,) int32."""
    x1 = jnp.transpose(y1, (0, 2, 3, 1)).astype(jnp.float32)   # NCHW -> NHWC
    x2 = jnp.transpose(y2, (0, 2, 3, 1)).astype(jnp.float32)

    t = backbone_forward(x1, params['backbone'])
    # classifier on detached features
    cls_pred = classifier_forward(jax.lax.stop_gradient(t),
                                  params['cls_w'], params['cls_b'], 10)

    z1 = mlp_forward(t, params['projector'])
    z2 = mlp_forward(backbone_forward(x2, params['backbone2']),
                     params['projector2'])
    p1 = mlp_forward(z1, params['predictor'])
    p2 = mlp_forward(z2, params['predictor'])

    ssl_loss = ssl_loss_pallas(p1, jax.lax.stop_gradient(z2),
                               p2, jax.lax.stop_gradient(z1))

    # TODO(synk): dynamic boolean masking (labels != -1) produces data-dependent
    # shapes; done eagerly on concrete arrays rather than inside a kernel.
    mask = labels != -1
    cls_pred_sel = cls_pred[mask]
    labels_sel = labels[mask]
    if int(cls_pred_sel.shape[0]) > 0:
        logz = jax.nn.logsumexp(cls_pred_sel, axis=1)
        picked = cls_pred_sel[jnp.arange(cls_pred_sel.shape[0]), labels_sel]
        cls_loss = jnp.mean(logz - picked)
    else:
        cls_loss = (0.0 * jnp.mean(params['cls_w'].astype(jnp.float32)) +
                    0.0 * jnp.mean(params['cls_b']))

    return ssl_loss, cls_loss, z1, cls_pred_sel


# ----------------------------------------------------------------------------
# Main.
# ----------------------------------------------------------------------------
if __name__ == "__main__":
    keys = _key_iter(jax.random.PRNGKey(0))

    # Synthetic "args": projector = "64-32", predictor = "16-32"
    proj_sizes = [512, 64, 32]
    pred_sizes = [32, 16, 32]

    backbone = make_resnet18_params(keys, in_ch=3)
    # backbone2 = deepcopy(backbone) with conv1 replaced by a fresh 1-channel conv
    backbone2 = dict(backbone)
    backbone2['conv1'] = _conv_param(next(keys), 7, 7, 1, 64)

    projector = make_mlp_params(keys, proj_sizes)
    projector2 = dict(projector)            # deepcopy -> same weight values
    predictor = make_mlp_params(keys, pred_sizes)

    params = {
        'backbone': backbone,
        'backbone2': backbone2,
        'projector': projector,
        'projector2': projector2,
        'predictor': predictor,
        'cls_w': _lin_w_padded(next(keys), 512, 10),     # (512, 128) bf16
        'cls_b': jnp.zeros((1, 128), jnp.float32),
    }

    # Small inputs consistent with the module: y1 is RGB, y2 is single-channel.
    kin = jax.random.PRNGKey(0)
    k1, k2 = jax.random.split(kin)
    y1 = jax.random.normal(k1, (2, 3, 32, 32), jnp.float32)
    y2 = jax.random.normal(k2, (2, 1, 32, 32), jnp.float32)
    labels = jnp.array([3, -1], dtype=jnp.int32)

    ssl_loss, cls_loss, z1, cls_pred = simsiam_forward(params, y1, y2, labels)
    jax.block_until_ready((ssl_loss, cls_loss, z1, cls_pred))
    print("KERNEL_OK")
</pallas_src>

<mosaic_0001>
module attributes {stable_mosaic.version = 11 : i64} {
  func.func @_mm_kernel(%arg0: i32, %arg1: i32, %arg2: memref<256x256xbf16, #tpu.memory_space<vmem>>, %arg3: memref<256x128xbf16, #tpu.memory_space<vmem>>, %arg4: memref<256x128xf32, #tpu.memory_space<vmem>>) attributes {dimension_semantics = [#tpu.dimension_semantics<parallel>, #tpu.dimension_semantics<parallel>], iteration_bounds = array<i64: 2, 1>, scalar_prefetch = 0 : i64, scratch_operands = 0 : i64, tpu.core_type = #tpu.core_type<tc>, window_params = [{transform_indices = @transform_0, window_bounds = array<i64: 256, 256>}, {transform_indices = @transform_1, window_bounds = array<i64: 256, 128>}, {transform_indices = @transform_2, window_bounds = array<i64: 256, 128>}]} {
    %c0 = arith.constant 0 : index
    %c0_0 = arith.constant 0 : index
    %0 = vector.load %arg2[%c0, %c0_0] : memref<256x256xbf16, #tpu.memory_space<vmem>>, vector<256x256xbf16>
    %c0_1 = arith.constant 0 : index
    %c0_2 = arith.constant 0 : index
    %1 = vector.load %arg3[%c0_1, %c0_2] : memref<256x128xbf16, #tpu.memory_space<vmem>>, vector<256x128xbf16>
    %cst = arith.constant dense<0.000000e+00> : vector<256x128xf32>
    %2 = tpu.matmul %0, %1, %cst {dimension_numbers = #tpu.dot_dimension_numbers<[1], [0], [0], [1], [0, 0, 1, 1], [], []>} : vector<256x256xbf16>, vector<256x128xbf16>, vector<256x128xf32> -> vector<256x128xf32>
    %c0_3 = arith.constant 0 : index
    %c0_4 = arith.constant 0 : index
    %3 = vector.load %arg4[%c0_3, %c0_4] : memref<256x128xf32, #tpu.memory_space<vmem>>, vector<256x128xf32>
    tpu.vector_store %arg4[%c0_3, %c0_4], %2 {strides = array<i32>} : memref<256x128xf32, #tpu.memory_space<vmem>>, vector<256x128xf32>,
    return
  }
  func.func @transform_0(%arg0: i32, %arg1: i32) -> (i32, i32) {
    %c0_i32 = arith.constant 0 : i32
    %c0_i32_0 = arith.constant 0 : i32
    return %arg0, %c0_i32 : i32, i32
  }
  func.func @transform_1(%arg0: i32, %arg1: i32) -> (i32, i32) {
    %c0_i32 = arith.constant 0 : i32
    %c0_i32_0 = arith.constant 0 : i32
    return %c0_i32, %arg1 : i32, i32
  }
  func.func @transform_2(%arg0: i32, %arg1: i32) -> (i32, i32) {
    %c0_i32 = arith.constant 0 : i32
    return %arg0, %arg1 : i32, i32
  }
}

</mosaic_0001>

<llo_original>
// kernel: tpu_custom_call.1
$region0: #{tpu_custom_call.1}
  #allocation0 [shape = 'u32[]', space=smem, size = 0x4, offset = 0x4, fixed_abs, tag = 'smem constant byte address 0x4 - core index']
  #allocation1 [shape = 'u32[72,128]{1,0:T(1,128)}', space=vmem, size = 0x9000, scoped, tag = 'internal scratch']
  %s0 = inlined_call_operand.hbm [shape: bf16[512,256], index: 0, kind: input, shape index: {}]
  %s1 = inlined_call_operand.hbm [shape: bf16[256,128], index: 1, kind: input, shape index: {}]
  %s2 = inlined_call_operand.hbm [shape: f32[512,128], index: 2, kind: output, shape index: {}]
  %s3 = sld [smem:[#allocation0]]
  $region49: #{tpu_custom_call.1} parent=0
    _
  %s5 = ssub.s32 1, %s3
  %s6 = scalar_select 0, %s5, %s3
  $region1: #{tpu_custom_call.1} parent=0
    #allocation2 [shape = 'u8[262144]{0}', space=vmem, size = 0x40000, scoped, tag = 'input window, operand 0']
    #allocation3 [shape = 's32[2]{0}', space=sflag, size = 0x8, scoped, tag = 'scoped memory for tpu_custom_call.1']
    #allocation4 [shape = 's32[2]{0}', space=sflag, size = 0x8, scoped, tag = 'scoped memory for tpu_custom_call.1']
    #allocation5 [shape = 'u8[65536]{0}', space=vmem, size = 0x10000, scoped, tag = 'input window, operand 1, single buffered']
    #allocation6 [shape = 's32[1]{0}', space=sflag, size = 0x4, scoped, tag = 'scoped memory for tpu_custom_call.1']
    #allocation7 [shape = 'u8[262144]{0}', space=vmem, size = 0x40000, scoped, tag = 'output window, operand 0']
    %7 = vsyncpa [#allocation3], 0
    %s8 = scalar_lea.sflag [#allocation3], 1
    %9 = vsyncpa %s8, 0
    %10 = vsyncpa [#allocation6], 0
    %11 = vsyncpa [#allocation4], 0
    %s12 = scalar_lea.sflag [#allocation4], 1
    %13 = vsyncpa %s12, 0
    loop: start=0, step=1, limit=4
    $region2: #{tpu_custom_call.1} parent=1 // loop_pre_header
      _
    $region3: #{tpu_custom_call.1} parent=1 // loop_header
      %s15 = sphi 0, %s19
      %p16 = scmp.ge.s32.totalorder %s15, 4
      %s22 = sphi 0, %s34
      %s23 = sphi 0, %s30
      %s24 = sphi 0, %s22
      %s25 = sphi 0, %s23
      %s26 = sphi 0, %s24
      %s27 = sphi 0, %s25
      %s37 = sphi 0, %s39
      %s40 = sphi 0, %s37
      %s41 = sphi 0, %s40
      %s57 = sphi 0, %s41
      %s63 = sphi 0, %s65
      %s66 = sphi 0, %s63
      %s67 = sphi 0, %s66
      %s83 = sphi 0, %s67
      %s91 = sphi 0, %s93
      %s94 = sphi 0, %s91
      %s95 = sphi 0, %s94
      %s111 = sphi 0, %s95
    $region4: #{tpu_custom_call.1} parent=1 // loop_header_branch
      %18 = sbr.rel (%p16) target = $region8
    $region5: #{tpu_custom_call.1} parent=1 // loop_body
      %s20 = ssub.s32 %s15, 1
      %s21 = ssub.s32 %s15, 2
      %s28 = sadd.s32 1, %s23
      %p29 = scmp.ge.s32.totalorder %s28, 1
      %s30 = scalar_select %p29, 0, %s28
      %s31 = sadd.s32 1, %s22
      %s32 = scalar_select %p29, %s31, %s22
      %p33 = scmp.ge.s32.totalorder %s32, 2
      %s34 = scalar_select %p33, 0, %s32
      %s35 = ssub.s32 %s22, %s34
      %p36 = scmp.eq.s32.totalorder %s35, 0
      %s38 = sadd.s32 %s37, 1
      %s39 = scalar_select %p36, %s37, %s38
      %p42 = pneg %p36
      %p43 = scmp.eq.s32.totalorder %s15, 1
      %p44 = por %p42, %p43
      %p45 = scmp.ne.s32.totalorder %s37, %s40
      %p46 = scmp.eq.s32.totalorder %s15, 0
      %p47 = por %p45, %p46
      %p48 = scmp.ne.s32.totalorder %s37, %s40
      %p49 = scmp.eq.s32.totalorder %s20, 1
      %p50 = por %p48, %p49
      %p51 = scmp.ne.s32.totalorder %s40, %s41
      %p52 = scmp.eq.s32.totalorder %s20, 0
      %p53 = por %p51, %p52
      %p54 = scmp.ne.s32.totalorder %s40, %s41
      %p55 = scmp.eq.s32.totalorder %s21, 1
      %p56 = por %p54, %p55
      %p58 = scmp.ne.s32.totalorder %s41, %s57
      %p59 = scmp.eq.s32.totalorder %s21, 0
      %p60 = por %p58, %p59
      %s61 = ssub.s32 %s23, %s30
      %p62 = scmp.eq.s32.totalorder %s61, 0
      %s64 = sadd.s32 %s63, 1
      %s65 = scalar_select %p62, %s63, %s64
      %p68 = pneg %p62
      %p69 = scmp.eq.s32.totalorder %s15, 1
      %p70 = por %p68, %p69
      %p71 = scmp.ne.s32.totalorder %s63, %s66
      %p72 = scmp.eq.s32.totalorder %s15, 0
      %p73 = por %p71, %p72
      %p74 = scmp.ne.s32.totalorder %s63, %s66
      %p75 = scmp.eq.s32.totalorder %s20, 1
      %p76 = por %p74, %p75
      %p77 = scmp.ne.s32.totalorder %s66, %s67
      %p78 = scmp.eq.s32.totalorder %s20, 0
      %p79 = por %p77, %p78
      %p80 = scmp.ne.s32.totalorder %s66, %s67
      %p81 = scmp.eq.s32.totalorder %s21, 1
      %p82 = por %p80, %p81
      %p84 = scmp.ne.s32.totalorder %s67, %s83
      %p85 = scmp.eq.s32.totalorder %s21, 0
      %p86 = por %p84, %p85
      %s87 = ssub.s32 %s22, %s34
      %s88 = ssub.s32 %s23, %s30
      %s89 = sor.u32 %s87, %s88
      %p90 = scmp.eq.s32.totalorder %s89, 0
      %s92 = sadd.s32 %s91, 1
      %s93 = scalar_select %p90, %s91, %s92
      %p96 = pneg %p90
      %p97 = scmp.eq.s32.totalorder %s15, 1
      %p98 = por %p96, %p97
      %p99 = scmp.ne.s32.totalorder %s91, %s94
      %p100 = scmp.eq.s32.totalorder %s15, 0
      %p101 = por %p99, %p100
      %p102 = scmp.ne.s32.totalorder %s91, %s94
      %p103 = scmp.eq.s32.totalorder %s20, 1
      %p104 = por %p102, %p103
      %p105 = scmp.ne.s32.totalorder %s94, %s95
      %p106 = scmp.eq.s32.totalorder %s20, 0
      %p107 = por %p105, %p106
      %p108 = scmp.ne.s32.totalorder %s94, %s95
      %p109 = scmp.eq.s32.totalorder %s21, 1
      %p110 = por %p108, %p109
      %p112 = scmp.ne.s32.totalorder %s95, %s111
      %p113 = scmp.eq.s32.totalorder %s21, 0
      %p114 = por %p112, %p113
      %p115 = scmp.le.s32.totalorder 1, %s15
      %p116 = scmp.lt.s32.totalorder %s15, 3
      %p117 = pnand %p115, %p116
      %p118 = pneg %p117
      // Predicated region
      $region9: #{tpu_custom_call.1} parent=5 // pred_check
        _
      $region10: #{tpu_custom_call.1} parent=5 // pred_check_branch
        %120 = sbr.rel (%p117) target = $region12
      $region11: #{tpu_custom_call.1} parent=5 // pred_region
        %s121 = ssub.s32 %s15, 1
        // Predicated region
        $region13: #{tpu_custom_call.1} parent=11 // pred_check
          %p122 = pneg %p79
        $region14: #{tpu_custom_call.1} parent=11 // pred_check_branch
          %124 = sbr.rel (%p122) target = $region16
        $region15: #{tpu_custom_call.1} parent=11 // pred_region
          %126 = vsyncadd [#allocation6], 0
          %s127 = smul.addr %s25, 4
          %s128 = scalar_lea.hbm %s1, %s127
          %s129 = sshll.u32 %s128, 4
          %s130 = int_to_ptr.hbm [resolvable:$true] %s129
          %s131 = sshll.u32 [#allocation5], 4
          %s132 = int_to_ptr.vmem [resolvable:$true] %s131
          %137 = dma.hbm_to_vmem [thread:$0]  %s130, 2048, %s132, [#allocation6], 64, 64, 4
        $region16: #{tpu_custom_call.1} parent=11 // pred_fallthru
          _
      $region12: #{tpu_custom_call.1} parent=5 // pred_fallthru
        _
      %p138 = scmp.lt.s32.totalorder %s15, 2
      // Predicated region
      $region17: #{tpu_custom_call.1} parent=5 // pred_check
        %p139 = pneg %p138
      $region18: #{tpu_custom_call.1} parent=5 // pred_check_branch
        %141 = sbr.rel (%p139) target = $region20
      $region19: #{tpu_custom_call.1} parent=5 // pred_region
        // Predicated region
        $region21: #{tpu_custom_call.1} parent=19 // pred_check
          %p142 = pneg %p47
        $region22: #{tpu_custom_call.1} parent=19 // pred_check_branch
          %144 = sbr.rel (%p142) target = $region24
        $region23: #{tpu_custom_call.1} parent=19 // pred_region
          %s145 = sand.u32 %s37, 1
          %s146 = scalar_lea.sflag [#allocation3], %s145
          %s147 = sand.u32 %s37, 1
          %s148 = smul.addr %s147, 256
          %s149 = scalar_lea.vmem [#allocation2], %s148
          %s150 = smul.u32 32, %s22
          %152 = vsyncadd %s146, 0
          %s153 = smul.addr %s150, 2
          %s154 = smul.addr %s153, 4
          %s155 = scalar_lea.hbm %s0, %s154
          %s156 = sshll.u32 %s155, 4
          %s157 = int_to_ptr.hbm [resolvable:$true] %s156
          %s158 = sshll.u32 %s149, 4
          %s159 = int_to_ptr.vmem [resolvable:$true] %s158
          %164 = dma.hbm_to_vmem [thread:$0]  %s157, 4096, %s159, %s146, 128, 128, 8
        $region24: #{tpu_custom_call.1} parent=19 // pred_fallthru
          _
      $region20: #{tpu_custom_call.1} parent=5 // pred_fallthru
        _
      %p165 = scmp.le.s32.totalorder 1, %s15
      %p166 = scmp.lt.s32.totalorder %s15, 3
      %p167 = pnand %p165, %p166
      %p168 = pneg %p167
      // Predicated region
      $region25: #{tpu_custom_call.1} parent=5 // pred_check
        _
      $region26: #{tpu_custom_call.1} parent=5 // pred_check_branch
        %170 = sbr.rel (%p167) target = $region28
      $region27: #{tpu_custom_call.1} parent=5 // pred_region
        %s171 = ssub.s32 %s15, 1
        %s172 = sand.u32 %s40, 1
        %s173 = scalar_lea.sflag [#allocation3], %s172
        %s174 = sand.u32 %s40, 1
        %s175 = smul.addr %s174, 256
        %s176 = scalar_lea.vmem [#allocation2], %s175
        // Predicated region
        $region29: #{tpu_custom_call.1} parent=27 // pred_check
          %p177 = pneg %p53
        $region30: #{tpu_custom_call.1} parent=27 // pred_check_branch
          %179 = sbr.rel (%p177) target = $region32
        $region31: #{tpu_custom_call.1} parent=27 // pred_region
          %181 = dma.done %s173, 4096
        $region32: #{tpu_custom_call.1} parent=27 // pred_fallthru
          _
        // Predicated region
        $region33: #{tpu_custom_call.1} parent=27 // pred_check
          %p182 = pneg %p79
        $region34: #{tpu_custom_call.1} parent=27 // pred_check_branch
          %184 = sbr.rel (%p182) target = $region36
        $region35: #{tpu_custom_call.1} parent=27 // pred_region
          %186 = dma.done [#allocation6], 2048
        $region36: #{tpu_custom_call.1} parent=27 // pred_fallthru
          _
        %s187 = sand.u32 %s40, 1
        %s188 = scalar_lea.sflag [#allocation3], %s187
        %s189 = sand.u32 %s40, 1
        %s190 = smul.addr %s189, 256
        %s191 = scalar_lea.vmem [#allocation2], %s190
        %p192 = pneg %p53
        %p193 = pneg %p50
        %p194 = pneg %p79
        %p195 = pneg %p76
        %p196 = pneg %p107
        %p197 = pneg %p104
        %s198 = sand.u32 %s94, 1
        %s199 = scalar_lea.sflag [#allocation4], %s198
        %s200 = sand.u32 %s94, 1
        %s201 = smul.addr %s200, 256
        %s202 = scalar_lea.vmem [#allocation7], %s201
        %s203 = smul.u32 32, %s24
        %s204 = smul.u32 32, %s24
        %v205 = vld [vmem:[%s176] sm:$0xff]
        %v206 = vld [vmem:[%s176 + $0x8] sm:$0xff]
        %v207 = vld [vmem:[%s176 + $0x10] sm:$0xff]
        %v208 = vld [vmem:[%s176 + $0x18] sm:$0xff]
        %v209 = vld [vmem:[%s176 + $0x20] sm:$0xff]
        %v210 = vld [vmem:[%s176 + $0x28] sm:$0xff]
        %v211 = vld [vmem:[%s176 + $0x30] sm:$0xff]
        %v212 = vld [vmem:[%s176 + $0x38] sm:$0xff]
        %v213 = vld [vmem:[%s176 + $0x40] sm:$0xff]
        %v214 = vld [vmem:[%s176 + $0x48] sm:$0xff]
        %v215 = vld [vmem:[%s176 + $0x50] sm:$0xff]
        %v216 = vld [vmem:[%s176 + $0x58] sm:$0xff]
        %v217 = vld [vmem:[%s176 + $0x60] sm:$0xff]
        %v218 = vld [vmem:[%s176 + $0x68] sm:$0xff]
        %v219 = vld [vmem:[%s176 + $0x70] sm:$0xff]
        %v220 = vld [vmem:[%s176 + $0x78] sm:$0xff]
        %v221 = vld [vmem:[%s176 + $0x80] sm:$0xff]
        %v222 = vld [vmem:[%s176 + $0x88] sm:$0xff]
        %v223 = vld [vmem:[%s176 + $0x90] sm:$0xff]
        %v224 = vld [vmem:[%s176 + $0x98] sm:$0xff]
        %v225 = vld [vmem:[%s176 + $0xa0] sm:$0xff]
        %v226 = vld [vmem:[%s176 + $0xa8] sm:$0xff]
        %v227 = vld [vmem:[%s176 + $0xb0] sm:$0xff]
        %v228 = vld [vmem:[%s176 + $0xb8] sm:$0xff]
        %v229 = vld [vmem:[%s176 + $0xc0] sm:$0xff]
        %v230 = vld [vmem:[%s176 + $0xc8] sm:$0xff]
        %v231 = vld [vmem:[%s176 + $0xd0] sm:$0xff]
        %v232 = vld [vmem:[%s176 + $0xd8] sm:$0xff]
        %v233 = vld [vmem:[%s176 + $0xe0] sm:$0xff]
        %v234 = vld [vmem:[%s176 + $0xe8] sm:$0xff]
        %v235 = vld [vmem:[%s176 + $0xf0] sm:$0xff]
        %v236 = vld [vmem:[%s176 + $0xf8] sm:$0xff]
        %v237 = vld [vmem:[#allocation5] sm:$0xf]
        %v238 = vld [vmem:[#allocation5 + $0x4] sm:$0xf]
        %v239 = vld [vmem:[#allocation5 + $0x8] sm:$0xf]
        %v240 = vld [vmem:[#allocation5 + $0xc] sm:$0xf]
        %v241 = vld [vmem:[#allocation5 + $0x10] sm:$0xf]
        %v242 = vld [vmem:[#allocation5 + $0x14] sm:$0xf]
        %v243 = vld [vmem:[#allocation5 + $0x18] sm:$0xf]
        %v244 = vld [vmem:[#allocation5 + $0x1c] sm:$0xf]
        %v245 = vld [vmem:[#allocation5 + $0x20] sm:$0xf]
        %v246 = vld [vmem:[#allocation5 + $0x24] sm:$0xf]
        %v247 = vld [vmem:[#allocation5 + $0x28] sm:$0xf]
        %v248 = vld [vmem:[#allocation5 + $0x2c] sm:$0xf]
        %v249 = vld [vmem:[#allocation5 + $0x30] sm:$0xf]
        %v250 = vld [vmem:[#allocation5 + $0x34] sm:$0xf]
        %v251 = vld [vmem:[#allocation5 + $0x38] sm:$0xf]
        %v252 = vld [vmem:[#allocation5 + $0x3c] sm:$0xf]
        %v253 = vld [vmem:[#allocation5 + $0x40] sm:$0xf]
        %v254 = vld [vmem:[#allocation5 + $0x44] sm:$0xf]
        %v255 = vld [vmem:[#allocation5 + $0x48] sm:$0xf]
        %v256 = vld [vmem:[#allocation5 + $0x4c] sm:$0xf]
        %v257 = vld [vmem:[#allocation5 + $0x50] sm:$0xf]
        %v258 = vld [vmem:[#allocation5 + $0x54] sm:$0xf]
        %v259 = vld [vmem:[#allocation5 + $0x58] sm:$0xf]
        %v260 = vld [vmem:[#allocation5 + $0x5c] sm:$0xf]
        %v261 = vld [vmem:[#allocation5 + $0x60] sm:$0xf]
        %v262 = vld [vmem:[#allocation5 + $0x64] sm:$0xf]
        %v263 = vld [vmem:[#allocation5 + $0x68] sm:$0xf]
        %v264 = vld [vmem:[#allocation5 + $0x6c] sm:$0xf]
        %v265 = vld [vmem:[#allocation5 + $0x70] sm:$0xf]
        %v266 = vld [vmem:[#allocation5 + $0x74] sm:$0xf]
        %v267 = vld [vmem:[#allocation5 + $0x78] sm:$0xf]
        %v268 = vld [vmem:[#allocation5 + $0x7c] sm:$0xf]
        %v301 = vunpack.c.l.b16 %v205
        %v302 = vunpack.c.h.b16 %v205
        %v303 = vunpack.c.l.b16 %v206
        %v304 = vunpack.c.h.b16 %v206
        %v305 = vunpack.c.l.b16 %v207
        %v306 = vunpack.c.h.b16 %v207
        %v307 = vunpack.c.l.b16 %v208
        %v308 = vunpack.c.h.b16 %v208
        %v309 = vunpack.c.l.b16 %v209
        %v310 = vunpack.c.h.b16 %v209
        %v311 = vunpack.c.l.b16 %v210
        %v312 = vunpack.c.h.b16 %v210
        %v313 = vunpack.c.l.b16 %v211
        %v314 = vunpack.c.h.b16 %v211
        %v315 = vunpack.c.l.b16 %v212
        %v316 = vunpack.c.h.b16 %v212
        %v317 = vunpack.c.l.b16 %v213
        %v318 = vunpack.c.h.b16 %v213
        %v319 = vunpack.c.l.b16 %v214
        %v320 = vunpack.c.h.b16 %v214
        %v321 = vunpack.c.l.b16 %v215
        %v322 = vunpack.c.h.b16 %v215
        %v323 = vunpack.c.l.b16 %v216
        %v324 = vunpack.c.h.b16 %v216
        %v325 = vunpack.c.l.b16 %v217
        %v326 = vunpack.c.h.b16 %v217
        %v327 = vunpack.c.l.b16 %v218
        %v328 = vunpack.c.h.b16 %v218
        %v329 = vunpack.c.l.b16 %v219
        %v330 = vunpack.c.h.b16 %v219
        %v331 = vunpack.c.l.b16 %v220
        %v332 = vunpack.c.h.b16 %v220
        %v333 = vunpack.c.l.b16 %v221
        %v334 = vunpack.c.h.b16 %v221
        %v335 = vunpack.c.l.b16 %v222
        %v336 = vunpack.c.h.b16 %v222
        %v337 = vunpack.c.l.b16 %v223
        %v338 = vunpack.c.h.b16 %v223
        %v339 = vunpack.c.l.b16 %v224
        %v340 = vunpack.c.h.b16 %v224
        %v341 = vunpack.c.l.b16 %v225
        %v342 = vunpack.c.h.b16 %v225
        %v343 = vunpack.c.l.b16 %v226
        %v344 = vunpack.c.h.b16 %v226
        %v345 = vunpack.c.l.b16 %v227
        %v346 = vunpack.c.h.b16 %v227
        %v347 = vunpack.c.l.b16 %v228
        %v348 = vunpack.c.h.b16 %v228
        %v349 = vunpack.c.l.b16 %v229
        %v350 = vunpack.c.h.b16 %v229
        %v351 = vunpack.c.l.b16 %v230
        %v352 = vunpack.c.h.b16 %v230
        %v353 = vunpack.c.l.b16 %v231
        %v354 = vunpack.c.h.b16 %v231
        %v355 = vunpack.c.l.b16 %v232
        %v356 = vunpack.c.h.b16 %v232
        %v357 = vunpack.c.l.b16 %v233
        %v358 = vunpack.c.h.b16 %v233
        %v359 = vunpack.c.l.b16 %v234
        %v360 = vunpack.c.h.b16 %v234
        %v361 = vunpack.c.l.b16 %v235
        %v362 = vunpack.c.h.b16 %v235
        %v363 = vunpack.c.l.b16 %v236
        %v364 = vunpack.c.h.b16 %v236
        %v365 = vpack.c.b16 %v303, %v301
        %v366 = vpack.c.b16 %v304, %v302
        %v367 = vpack.c.b16 %v307, %v305
        %v368 = vpack.c.b16 %v308, %v306
        %v369 = vpack.c.b16 %v311, %v309
        %v370 = vpack.c.b16 %v312, %v310
        %v371 = vpack.c.b16 %v315, %v313
        %v372 = vpack.c.b16 %v316, %v314
        %v373 = vpack.c.b16 %v319, %v317
        %v374 = vpack.c.b16 %v320, %v318
        %v375 = vpack.c.b16 %v323, %v321
        %v376 = vpack.c.b16 %v324, %v322
        %v377 = vpack.c.b16 %v327, %v325
        %v378 = vpack.c.b16 %v328, %v326
        %v379 = vpack.c.b16 %v331, %v329
        %v380 = vpack.c.b16 %v332, %v330
        %v381 = vpack.c.b16 %v335, %v333
        %v382 = vpack.c.b16 %v336, %v334
        %v383 = vpack.c.b16 %v339, %v337
        %v384 = vpack.c.b16 %v340, %v338
        %v385 = vpack.c.b16 %v343, %v341
        %v386 = vpack.c.b16 %v344, %v342
        %v387 = vpack.c.b16 %v347, %v345
        %v388 = vpack.c.b16 %v348, %v346
        %v389 = vpack.c.b16 %v351, %v349
        %v390 = vpack.c.b16 %v352, %v350
        %v391 = vpack.c.b16 %v355, %v353
        %v392 = vpack.c.b16 %v356, %v354
        %v393 = vpack.c.b16 %v359, %v357
        %v394 = vpack.c.b16 %v360, %v358
        %v395 = vpack.c.b16 %v363, %v361
        %v396 = vpack.c.b16 %v364, %v362
        %v461 = vunpack.c.l.b16 %v237
        %v462 = vunpack.c.l.b16 %v238
        %v463 = vunpack.c.l.b16 %v239
        %v464 = vunpack.c.l.b16 %v240
        %v465 = vunpack.c.l.b16 %v241
        %v466 = vunpack.c.l.b16 %v242
        %v467 = vunpack.c.l.b16 %v243
        %v468 = vunpack.c.l.b16 %v244
        %v469 = vunpack.c.l.b16 %v245
        %v470 = vunpack.c.l.b16 %v246
        %v471 = vunpack.c.l.b16 %v247
        %v472 = vunpack.c.l.b16 %v248
        %v473 = vunpack.c.l.b16 %v249
        %v474 = vunpack.c.l.b16 %v250
        %v475 = vunpack.c.l.b16 %v251
        %v476 = vunpack.c.l.b16 %v252
        %v477 = vunpack.c.l.b16 %v253
        %v478 = vunpack.c.l.b16 %v254
        %v479 = vunpack.c.l.b16 %v255
        %v480 = vunpack.c.l.b16 %v256
        %v481 = vunpack.c.l.b16 %v257
        %v482 = vunpack.c.l.b16 %v258
        %v483 = vunpack.c.l.b16 %v259
        %v484 = vunpack.c.l.b16 %v260
        %v485 = vunpack.c.l.b16 %v261
        %v486 = vunpack.c.l.b16 %v262
        %v487 = vunpack.c.l.b16 %v263
        %v488 = vunpack.c.l.b16 %v264
        %v489 = vunpack.c.l.b16 %v265
        %v490 = vunpack.c.l.b16 %v266
        %v491 = vunpack.c.l.b16 %v267
        %v492 = vunpack.c.l.b16 %v268
        %v493 = vpack.c.b16 %v462, %v461
        %v494 = vpack.c.b16 %v464, %v463
        %v495 = vpack.c.b16 %v466, %v465
        %v496 = vpack.c.b16 %v468, %v467
        %v497 = vpack.c.b16 %v470, %v469
        %v498 = vpack.c.b16 %v472, %v471
        %v499 = vpack.c.b16 %v474, %v473
        %v500 = vpack.c.b16 %v476, %v475
        %v501 = vpack.c.b16 %v478, %v477
        %v502 = vpack.c.b16 %v480, %v479
        %v503 = vpack.c.b16 %v482, %v481
        %v504 = vpack.c.b16 %v484, %v483
        %v505 = vpack.c.b16 %v486, %v485
        %v506 = vpack.c.b16 %v488, %v487
        %v507 = vpack.c.b16 %v490, %v489
        %v508 = vpack.c.b16 %v492, %v491
        %525 = vmatpush.bf16.msra.mxu0 %v500
        %526 = vmatpush.bf16.msra.mxu0 %v499
        %527 = vmatpush.bf16.msra.mxu0 %v498
        %528 = vmatpush.bf16.msra.mxu0 %v497
        %529 = vmatpush.bf16.msra.mxu0 %v496
        %530 = vmatpush.bf16.msra.mxu0 %v495
        %531 = vmatpush.bf16.msra.mxu0 %v494
        %532 = vmatpush.bf16.msra.mxu0 %v493
        %533 = vmatmul.bf16.gmra.mxu0 %v365
        %v534 = vpop.f32.mrf.mxu0
        %v535 = vadd.f32 0.0, %v534
        %v536 = vpop.f32.mrf.mxu0
        %v537 = vadd.f32 0.0, %v536
        %538 = vmatmul.bf16.gmra.mxu0 %v367
        %v539 = vpop.f32.mrf.mxu0
        %v540 = vadd.f32 0.0, %v539
        %v541 = vpop.f32.mrf.mxu0
        %v542 = vadd.f32 0.0, %v541
        %543 = vmatmul.bf16.gmra.mxu0 %v369
        %v544 = vpop.f32.mrf.mxu0
        %v545 = vadd.f32 0.0, %v544
        %v546 = vpop.f32.mrf.mxu0
        %v547 = vadd.f32 0.0, %v546
        %548 = vmatmul.bf16.gmra.mxu0 %v371
        %v549 = vpop.f32.mrf.mxu0
        %v550 = vadd.f32 0.0, %v549
        %v551 = vpop.f32.mrf.mxu0
        %v552 = vadd.f32 0.0, %v551
        %553 = vmatmul.bf16.gmra.mxu0 %v373
        %v554 = vpop.f32.mrf.mxu0
        %v555 = vadd.f32 0.0, %v554
        %v556 = vpop.f32.mrf.mxu0
        %v557 = vadd.f32 0.0, %v556
        %558 = vmatmul.bf16.gmra.mxu0 %v375
        %v559 = vpop.f32.mrf.mxu0
        %v560 = vadd.f32 0.0, %v559
        %v561 = vpop.f32.mrf.mxu0
        %v562 = vadd.f32 0.0, %v561
        %563 = vmatmul.bf16.gmra.mxu0 %v377
        %v564 = vpop.f32.mrf.mxu0
        %v565 = vadd.f32 0.0, %v564
        %v566 = vpop.f32.mrf.mxu0
        %v567 = vadd.f32 0.0, %v566
        %568 = vmatmul.bf16.gmra.mxu0 %v379
        %v569 = vpop.f32.mrf.mxu0
        %v570 = vadd.f32 0.0, %v569
        %v571 = vpop.f32.mrf.mxu0
        %v572 = vadd.f32 0.0, %v571
        %573 = vmatmul.bf16.gmra.mxu0 %v381
        %v574 = vpop.f32.mrf.mxu0
        %v575 = vadd.f32 0.0, %v574
        %v576 = vpop.f32.mrf.mxu0
        %v577 = vadd.f32 0.0, %v576
        %578 = vmatmul.bf16.gmra.mxu0 %v383
        %v579 = vpop.f32.mrf.mxu0
        %v580 = vadd.f32 0.0, %v579
        %v581 = vpop.f32.mrf.mxu0
        %v582 = vadd.f32 0.0, %v581
        %583 = vmatmul.bf16.gmra.mxu0 %v385
        %v584 = vpop.f32.mrf.mxu0
        %v585 = vadd.f32 0.0, %v584
        %v586 = vpop.f32.mrf.mxu0
        %v587 = vadd.f32 0.0, %v586
        %588 = vmatmul.bf16.gmra.mxu0 %v387
        %v589 = vpop.f32.mrf.mxu0
        %v590 = vadd.f32 0.0, %v589
        %v591 = vpop.f32.mrf.mxu0
        %v592 = vadd.f32 0.0, %v591
        %593 = vmatmul.bf16.gmra.mxu0 %v389
        %v594 = vpop.f32.mrf.mxu0
        %v595 = vadd.f32 0.0, %v594
        %v596 = vpop.f32.mrf.mxu0
        %v597 = vadd.f32 0.0, %v596
        %598 = vmatmul.bf16.gmra.mxu0 %v391
        %v599 = vpop.f32.mrf.mxu0
        %v600 = vadd.f32 0.0, %v599
        %v601 = vpop.f32.mrf.mxu0
        %v602 = vadd.f32 0.0, %v601
        %603 = vmatmul.bf16.gmra.mxu0 %v393
        %v604 = vpop.f32.mrf.mxu0
        %v605 = vadd.f32 0.0, %v604
        %v606 = vpop.f32.mrf.mxu0
        %v607 = vadd.f32 0.0, %v606
        %608 = vmatmul.bf16.gmra.mxu0 %v395
        %v609 = vpop.f32.mrf.mxu0
        %v610 = vadd.f32 0.0, %v609
        %v611 = vpop.f32.mrf.mxu0
        %v612 = vadd.f32 0.0, %v611
        %613 = vdwg.mxu0
        %614 = vmatpush.bf16.msra.mxu0 %v508
        %615 = vmatpush.bf16.msra.mxu0 %v507
        %616 = vmatpush.bf16.msra.mxu0 %v506
        %617 = vmatpush.bf16.msra.mxu0 %v505
        %618 = vmatpush.bf16.msra.mxu0 %v504
        %619 = vmatpush.bf16.msra.mxu0 %v503
        %620 = vmatpush.bf16.msra.mxu0 %v502
        %621 = vmatpush.bf16.msra.mxu0 %v501
        %622 = vmatmul.bf16.gmra.mxu0 %v366
        %v623 = vpop.f32.mrf.mxu0
        %v624 = vadd.f32 %v535, %v623
        %v625 = vpop.f32.mrf.mxu0
        %v626 = vadd.f32 %v537, %v625
        %627 = vmatmul.bf16.gmra.mxu0 %v368
        %v628 = vpop.f32.mrf.mxu0
        %v629 = vadd.f32 %v540, %v628
        %v630 = vpop.f32.mrf.mxu0
        %v631 = vadd.f32 %v542, %v630
        %632 = vmatmul.bf16.gmra.mxu0 %v370
        %v633 = vpop.f32.mrf.mxu0
        %v634 = vadd.f32 %v545, %v633
        %v635 = vpop.f32.mrf.mxu0
        %v636 = vadd.f32 %v547, %v635
        %637 = vmatmul.bf16.gmra.mxu0 %v372
        %v638 = vpop.f32.mrf.mxu0
        %v639 = vadd.f32 %v550, %v638
        %v640 = vpop.f32.mrf.mxu0
        %v641 = vadd.f32 %v552, %v640
        %642 = vmatmul.bf16.gmra.mxu0 %v374
        %v643 = vpop.f32.mrf.mxu0
        %v644 = vadd.f32 %v555, %v643
        %v645 = vpop.f32.mrf.mxu0
        %v646 = vadd.f32 %v557, %v645
        %647 = vmatmul.bf16.gmra.mxu0 %v376
        %v648 = vpop.f32.mrf.mxu0
        %v649 = vadd.f32 %v560, %v648
        %v650 = vpop.f32.mrf.mxu0
        %v651 = vadd.f32 %v562, %v650
        %652 = vmatmul.bf16.gmra.mxu0 %v378
        %v653 = vpop.f32.mrf.mxu0
        %v654 = vadd.f32 %v565, %v653
        %v655 = vpop.f32.mrf.mxu0
        %v656 = vadd.f32 %v567, %v655
        %657 = vmatmul.bf16.gmra.mxu0 %v380
        %v658 = vpop.f32.mrf.mxu0
        %v659 = vadd.f32 %v570, %v658
        %v660 = vpop.f32.mrf.mxu0
        %v661 = vadd.f32 %v572, %v660
        %662 = vmatmul.bf16.gmra.mxu0 %v382
        %v663 = vpop.f32.mrf.mxu0
        %v664 = vadd.f32 %v575, %v663
        %v665 = vpop.f32.mrf.mxu0
        %v666 = vadd.f32 %v577, %v665
        %667 = vmatmul.bf16.gmra.mxu0 %v384
        %v668 = vpop.f32.mrf.mxu0
        %v669 = vadd.f32 %v580, %v668
        %v670 = vpop.f32.mrf.mxu0
        %v671 = vadd.f32 %v582, %v670
        %672 = vmatmul.bf16.gmra.mxu0 %v386
        %v673 = vpop.f32.mrf.mxu0
        %v674 = vadd.f32 %v585, %v673
        %v675 = vpop.f32.mrf.mxu0
        %v676 = vadd.f32 %v587, %v675
        %677 = vmatmul.bf16.gmra.mxu0 %v388
        %v678 = vpop.f32.mrf.mxu0
        %v679 = vadd.f32 %v590, %v678
        %v680 = vpop.f32.mrf.mxu0
        %v681 = vadd.f32 %v592, %v680
        %682 = vmatmul.bf16.gmra.mxu0 %v390
        %v683 = vpop.f32.mrf.mxu0
        %v684 = vadd.f32 %v595, %v683
        %v685 = vpop.f32.mrf.mxu0
        %v686 = vadd.f32 %v597, %v685
        %687 = vmatmul.bf16.gmra.mxu0 %v392
        %v688 = vpop.f32.mrf.mxu0
        %v689 = vadd.f32 %v600, %v688
        %v690 = vpop.f32.mrf.mxu0
        %v691 = vadd.f32 %v602, %v690
        %692 = vmatmul.bf16.gmra.mxu0 %v394
        %v693 = vpop.f32.mrf.mxu0
        %v694 = vadd.f32 %v605, %v693
        %v695 = vpop.f32.mrf.mxu0
        %v696 = vadd.f32 %v607, %v695
        %697 = vmatmul.bf16.gmra.mxu0 %v396
        %v698 = vpop.f32.mrf.mxu0
        %v699 = vadd.f32 %v610, %v698
        %v700 = vpop.f32.mrf.mxu0
        %v701 = vadd.f32 %v612, %v700
        %702 = vdwg.mxu0
        %703 = vst [vmem:[%s202] sm:$0xff] %v624
        %704 = vst [vmem:[%s202 + $0x8] sm:$0xff] %v626
        %705 = vst [vmem:[%s202 + $0x10] sm:$0xff] %v629
        %706 = vst [vmem:[%s202 + $0x18] sm:$0xff] %v631
        %707 = vst [vmem:[%s202 + $0x20] sm:$0xff] %v634
        %708 = vst [vmem:[%s202 + $0x28] sm:$0xff] %v636
        %709 = vst [vmem:[%s202 + $0x30] sm:$0xff] %v639
        %710 = vst [vmem:[%s202 + $0x38] sm:$0xff] %v641
        %711 = vst [vmem:[%s202 + $0x40] sm:$0xff] %v644
        %712 = vst [vmem:[%s202 + $0x48] sm:$0xff] %v646
        %713 = vst [vmem:[%s202 + $0x50] sm:$0xff] %v649
        %714 = vst [vmem:[%s202 + $0x58] sm:$0xff] %v651
        %715 = vst [vmem:[%s202 + $0x60] sm:$0xff] %v654
        %716 = vst [vmem:[%s202 + $0x68] sm:$0xff] %v656
        %717 = vst [vmem:[%s202 + $0x70] sm:$0xff] %v659
        %718 = vst [vmem:[%s202 + $0x78] sm:$0xff] %v661
        %719 = vst [vmem:[%s202 + $0x80] sm:$0xff] %v664
        %720 = vst [vmem:[%s202 + $0x88] sm:$0xff] %v666
        %721 = vst [vmem:[%s202 + $0x90] sm:$0xff] %v669
        %722 = vst [vmem:[%s202 + $0x98] sm:$0xff] %v671
        %723 = vst [vmem:[%s202 + $0xa0] sm:$0xff] %v674
        %724 = vst [vmem:[%s202 + $0xa8] sm:$0xff] %v676
        %725 = vst [vmem:[%s202 + $0xb0] sm:$0xff] %v679
        %726 = vst [vmem:[%s202 + $0xb8] sm:$0xff] %v681
        %727 = vst [vmem:[%s202 + $0xc0] sm:$0xff] %v684
        %728 = vst [vmem:[%s202 + $0xc8] sm:$0xff] %v686
        %729 = vst [vmem:[%s202 + $0xd0] sm:$0xff] %v689
        %730 = vst [vmem:[%s202 + $0xd8] sm:$0xff] %v691
        %731 = vst [vmem:[%s202 + $0xe0] sm:$0xff] %v694
        %732 = vst [vmem:[%s202 + $0xe8] sm:$0xff] %v696
        %733 = vst [vmem:[%s202 + $0xf0] sm:$0xff] %v699
        %734 = vst [vmem:[%s202 + $0xf8] sm:$0xff] %v701
        %s735 = sand.u32 %s94, 1
        %s736 = scalar_lea.sflag [#allocation4], %s735
        %s737 = sand.u32 %s94, 1
        %s738 = smul.addr %s737, 256
        %s739 = scalar_lea.vmem [#allocation7], %s738
        // Predicated region
        $region37: #{tpu_custom_call.1} parent=27 // pred_check
          %p740 = pneg %p104
        $region38: #{tpu_custom_call.1} parent=27 // pred_check_branch
          %742 = sbr.rel (%p740) target = $region40
        $region39: #{tpu_custom_call.1} parent=27 // pred_region
          %s743 = smul.u32 32, %s24
          %745 = vsyncadd %s736, 0
          %s746 = sadd.s32 %s25, %s743
          %s747 = smul.addr %s746, 8
          %s748 = scalar_lea.hbm %s2, %s747
          %s749 = sshll.u32 %s739, 4
          %s750 = int_to_ptr.vmem [resolvable:$true] %s749
          %s751 = sshll.u32 %s748, 4
          %s752 = int_to_ptr.hbm [resolvable:$true] %s751
          %757 = dma.vmem_to_hbm [thread:$0]  %s750, 4096, %s752, %s736, 128, 128, 8
        $region40: #{tpu_custom_call.1} parent=27 // pred_fallthru
          _
      $region28: #{tpu_custom_call.1} parent=5 // pred_fallthru
        _
      %p758 = scmp.le.s32.totalorder 2, %s15
      // Predicated region
      $region41: #{tpu_custom_call.1} parent=5 // pred_check
        %p759 = pneg %p758
      $region42: #{tpu_custom_call.1} parent=5 // pred_check_branch
        %761 = sbr.rel (%p759) target = $region44
      $region43: #{tpu_custom_call.1} parent=5 // pred_region
        %s762 = ssub.s32 %s15, 2
        // Predicated region
        $region45: #{tpu_custom_call.1} parent=43 // pred_check
          %p763 = pneg %p110
        $region46: #{tpu_custom_call.1} parent=43 // pred_check_branch
          %765 = sbr.rel (%p763) target = $region48
        $region47: #{tpu_custom_call.1} parent=43 // pred_region
          %s766 = sand.u32 %s95, 1
          %s767 = scalar_lea.sflag [#allocation4], %s766
          %s768 = sand.u32 %s95, 1
          %s769 = smul.addr %s768, 256
          %s770 = scalar_lea.vmem [#allocation7], %s769
          %772 = dma.done %s767, 4096
        $region48: #{tpu_custom_call.1} parent=43 // pred_fallthru
          _
      $region44: #{tpu_custom_call.1} parent=5 // pred_fallthru
        _
    $region6: #{tpu_custom_call.1} parent=1 // loop_footer
      %s19 = sadd.s32 1, %s15
    $region7: #{tpu_custom_call.1} parent=1 // loop_footer_branch
      %14 = sbr.rel target = $region3
    $region8: #{tpu_custom_call.1} parent=1 // loop_exit
      _
    %773 = vsyncpa [#allocation3], 1
    %s774 = scalar_lea.sflag [#allocation3], 1
    %775 = vsyncpa %s774, 1
    %776 = vsyncpa [#allocation6], 1
    %777 = vsyncpa [#allocation4], 1
    %s778 = scalar_lea.sflag [#allocation4], 1
    %779 = vsyncpa %s778, 1

</llo_original>
